<compile_context>
chip_gen: v6e
topology: v6e:2x2x1
jax: 0.10.0
libtpu: 0.0.40
codegen_flags: <defaults>
</compile_context>

<pallas_src>
import numpy as np
import jax
import jax.numpy as jnp
from jax.experimental import pallas as pl
from jax.experimental.pallas import tpu as pltpu


_PI = np.float32(np.pi)
_PI_2 = np.float32(np.pi / 2)
_PI_4 = np.float32(np.pi / 4)
_TAN_3PI_8 = np.float32(2.414213562373095)   # tan(3*pi/8)
_TAN_PI_8 = np.float32(0.4142135623730951)   # tan(pi/8)


def _atan_pos(x):
    """atan(x) for x >= 0 (Cephes single-precision range reduction + polynomial)."""
    big = x > _TAN_3PI_8
    mid = x > _TAN_PI_8
    # Safe reduced arguments (no div-by-zero / inf ever enters the polynomial).
    x_big = -1.0 / jnp.where(big, x, jnp.float32(1.0))
    x_mid = (x - 1.0) / (x + 1.0)
    xr = jnp.where(big, x_big, jnp.where(mid, x_mid, x))
    off = jnp.where(big, _PI_2, jnp.where(mid, _PI_4, jnp.float32(0.0)))
    z = xr * xr
    p = (((np.float32(8.05374449538e-2) * z - np.float32(1.38776856032e-1)) * z
          + np.float32(1.99777106478e-1)) * z - np.float32(3.33329491539e-1))
    return off + xr + xr * z * p


def _atan(x):
    a = _atan_pos(jnp.abs(x))
    return jnp.where(x < 0.0, -a, a)


def _atan2(y, x):
    """Quadrant-correct atan2 built only from basic VPU ops (mul/div/cmp/select)."""
    safe_x = jnp.where(x == 0.0, jnp.float32(1.0), x)
    base = _atan(y / safe_x)
    corr = jnp.where(y >= 0.0, _PI, -_PI)
    res = jnp.where(x < 0.0, base + corr, base)
    on_axis = jnp.where(y > 0.0, _PI_2,
                        jnp.where(y < 0.0, -_PI_2, jnp.float32(0.0)))
    return jnp.where(x == 0.0, on_axis, res)


def iq_linear_kernel(x_ref, w_ref, bias_ref, off_ref, y_ref):
    x = x_ref[...]                       # (TB, K)
    k = x.shape[-1]
    w = w_ref[...]                       # (2K, 2N): [[cos_t, sin_t], [-sin_t, cos_t]]
    # Fused rotation: [real | imag] = cos(x) @ W_top + sin(x) @ W_bot + [cos_l | sin_l]
    ri = (jnp.dot(jnp.cos(x), w[:k, :], preferred_element_type=jnp.float32)
          + jnp.dot(jnp.sin(x), w[k:, :], preferred_element_type=jnp.float32)
          + bias_ref[...])               # (TB, 2N), lane-dense output slab
    n = ri.shape[-1] // 2
    real = ri[:, :n]
    imag = ri[:, n:]
    # Fused epilogue: y = pi/2*sigmoid(delta) - atan2(imag, real)
    y_ref[...] = off_ref[...] - _atan2(imag, real)


def _round_up(x, m):
    return ((x + m - 1) // m) * m


def iq_linear(inputs, theta, lambdas, delta, *, block_b=256):
    """Pallas implementation of IQLinear.forward.

    inputs:  (B, input_gates) float32
    theta:   (input_gates, output_gates) float32
    lambdas: (output_gates,) float32
    delta:   (output_gates,) float32
    returns: (B, output_gates) float32
    """
    inputs = inputs.astype(jnp.float32)
    B, K = inputs.shape
    K2, N = theta.shape
    assert K == K2

    # One-time parameter trig, hoisted out of the kernel's grid loop.
    cos_t = jnp.cos(theta).astype(jnp.float32)
    sin_t = jnp.sin(theta).astype(jnp.float32)
    w = jnp.concatenate(
        [jnp.concatenate([cos_t, sin_t], axis=1),
         jnp.concatenate([-sin_t, cos_t], axis=1)], axis=0)                 # (2K, 2N)
    bias = jnp.concatenate(
        [jnp.cos(lambdas), jnp.sin(lambdas)]).astype(jnp.float32).reshape(1, 2 * N)
    offset = (_PI_2 * jax.nn.sigmoid(delta)).astype(jnp.float32).reshape(1, N)

    # Batch tiling: tile is a multiple of 8 sublanes; pad batch to a tile multiple.
    bb = _round_up(min(block_b, _round_up(B, 8)), 8)
    b_pad = _round_up(B, bb)
    if b_pad != B:
        inputs = jnp.pad(inputs, ((0, b_pad - B), (0, 0)))
    grid = (b_pad // bb,)

    cost = pl.CostEstimate(
        flops=2 * b_pad * (2 * K) * (2 * N),
        transcendentals=2 * b_pad * K,                       # cos+sin of activations
        bytes_accessed=4 * (b_pad * K + 4 * K * N + 3 * N + b_pad * N),
    )

    y = pl.pallas_call(
        iq_linear_kernel,
        out_shape=jax.ShapeDtypeStruct((b_pad, N), jnp.float32),
        grid_spec=pltpu.PrefetchScalarGridSpec(
            num_scalar_prefetch=0,
            grid=grid,
            in_specs=[
                pl.BlockSpec((bb, K), lambda i: (i, 0)),          # activation tile
                pl.BlockSpec((2 * K, 2 * N), lambda i: (0, 0)),   # resident fused weights
                pl.BlockSpec((1, 2 * N), lambda i: (0, 0)),       # [cos_l | sin_l]
                pl.BlockSpec((1, N), lambda i: (0, 0)),           # pi/2*sigmoid(delta)
            ],
            out_specs=pl.BlockSpec((bb, N), lambda i: (i, 0)),
        ),
        compiler_params=pltpu.CompilerParams(
            dimension_semantics=("parallel",),
        ),
        cost_estimate=cost,
    )(inputs, w, bias, offset)

    return y[:B]


if __name__ == "__main__":
    batch = 8
    input_gates = 32
    output_gates = 128

    key = jax.random.PRNGKey(0)
    k_x, k_th, k_lam, k_del = jax.random.split(key, 4)

    # Deterministic "parameter init" mirroring nn.init.uniform_(-pi, pi).
    inputs = jax.random.uniform(
        k_x, (batch, input_gates), jnp.float32, minval=-np.pi, maxval=np.pi)
    theta = jax.random.uniform(
        k_th, (input_gates, output_gates), jnp.float32, minval=-np.pi, maxval=np.pi)
    lambdas = jax.random.uniform(
        k_lam, (output_gates,), jnp.float32, minval=-np.pi, maxval=np.pi)
    delta = jax.random.uniform(
        k_del, (output_gates,), jnp.float32, minval=-np.pi, maxval=np.pi)

    y = jax.jit(iq_linear)(inputs, theta, lambdas, delta)
    y = jax.block_until_ready(y)

    # Pure-JAX reference (same math as the PyTorch forward).
    cx, sx = jnp.cos(inputs), jnp.sin(inputs)
    ct, st = jnp.cos(theta), jnp.sin(theta)
    ref_real = cx @ ct - sx @ st + jnp.cos(lambdas)
    ref_imag = sx @ ct + cx @ st + jnp.sin(lambdas)
    ref_y = (np.pi / 2) * jax.nn.sigmoid(delta) - jnp.arctan2(ref_imag, ref_real)

    # Validate the hand-rolled atan2 (incl. branch cuts x<0, x==0, y==0) against
    # jnp.arctan2 on the plain-JAX path.
    ys_t = jnp.array([0.0, 1.0, -1.0, 0.5, -0.5, 3.0, -3.0, 1e-3, -1e-3], jnp.float32)
    xs_t = jnp.array([0.0, 1.0, -1.0, -2.0, 2.0, 0.0, 0.0, -1.0, -1.0], jnp.float32)
    yy, xx = jnp.meshgrid(ys_t, xs_t)
    atan2_err = jnp.max(jnp.abs(_atan2(yy, xx) - jnp.arctan2(yy, xx)))
    assert float(atan2_err) < 1e-5, f"atan2_err={float(atan2_err)}"

    # Compare only where atan2 is well-conditioned (away from the origin),
    # since MXU f32 matmuls use bf16 passes at default precision.
    well_cond = jnp.hypot(ref_real, ref_imag) > 1.0
    max_err = jnp.max(jnp.where(well_cond, jnp.abs(y - ref_y), 0.0))
    assert y.shape == (batch, output_gates)
    assert bool(jnp.all(jnp.isfinite(y)))
    assert float(max_err) < 5e-2, f"max_err={float(max_err)}"

    print("KERNEL_OK")
</pallas_src>

<mosaic_0001>
module attributes {stable_mosaic.version = 11 : i64} {
  func.func @iq_linear_kernel(%arg0: i32, %arg1: memref<8x32xf32, #tpu.memory_space<vmem>>, %arg2: memref<64x256xf32, #tpu.memory_space<vmem>>, %arg3: memref<1x256xf32, #tpu.memory_space<vmem>>, %arg4: memref<1x128xf32, #tpu.memory_space<vmem>>, %arg5: memref<8x128xf32, #tpu.memory_space<vmem>>) attributes {dimension_semantics = [#tpu.dimension_semantics<parallel>], iteration_bounds = array<i64: 1>, scalar_prefetch = 0 : i64, scratch_operands = 0 : i64, tpu.core_type = #tpu.core_type<tc>, window_params = [{transform_indices = @transform_0, window_bounds = array<i64: 8, 32>}, {pipeline_mode = #tpu.pipeline_mode<synchronous>, transform_indices = @transform_1, window_bounds = array<i64: 64, 256>}, {pipeline_mode = #tpu.pipeline_mode<synchronous>, transform_indices = @transform_2, window_bounds = array<i64: 1, 256>}, {pipeline_mode = #tpu.pipeline_mode<synchronous>, transform_indices = @transform_3, window_bounds = array<i64: 1, 128>}, {transform_indices = @transform_4, window_bounds = array<i64: 8, 128>}]} {
    %c0 = arith.constant 0 : index
    %c0_0 = arith.constant 0 : index
    %0 = vector.load %arg1[%c0, %c0_0] : memref<8x32xf32, #tpu.memory_space<vmem>>, vector<8x32xf32>
    %c0_1 = arith.constant 0 : index
    %c0_2 = arith.constant 0 : index
    %1 = vector.load %arg2[%c0_1, %c0_2] : memref<64x256xf32, #tpu.memory_space<vmem>>, vector<64x256xf32>
    %2 = math.cos %0 : vector<8x32xf32>
    %3 = vector.extract_strided_slice %1 {offsets = [0, 0], sizes = [32, 256], strides = [1, 1]} : vector<64x256xf32> to vector<32x256xf32>
    %cst = arith.constant dense<0.000000e+00> : vector<8x256xf32>
    %4 = tpu.matmul %2, %3, %cst {dimension_numbers = #tpu.dot_dimension_numbers<[1], [0], [0], [1], [0, 0, 1, 1], [], []>} : vector<8x32xf32>, vector<32x256xf32>, vector<8x256xf32> -> vector<8x256xf32>
    %5 = math.sin %0 : vector<8x32xf32>
    %6 = vector.extract_strided_slice %1 {offsets = [32, 0], sizes = [32, 256], strides = [1, 1]} : vector<64x256xf32> to vector<32x256xf32>
    %cst_3 = arith.constant dense<0.000000e+00> : vector<8x256xf32>
    %7 = tpu.matmul %5, %6, %cst_3 {dimension_numbers = #tpu.dot_dimension_numbers<[1], [0], [0], [1], [0, 0, 1, 1], [], []>} : vector<8x32xf32>, vector<32x256xf32>, vector<8x256xf32> -> vector<8x256xf32>
    %8 = arith.addf %4, %7 : vector<8x256xf32>
    %c0_4 = arith.constant 0 : index
    %c0_5 = arith.constant 0 : index
    %9 = vector.load %arg3[%c0_4, %c0_5] : memref<1x256xf32, #tpu.memory_space<vmem>>, vector<1x256xf32>
    %10 = vector.broadcast %9 : vector<1x256xf32> to vector<8x256xf32>
    %11 = arith.addf %8, %10 : vector<8x256xf32>
    %12 = vector.extract_strided_slice %11 {offsets = [0, 0], sizes = [8, 128], strides = [1, 1]} : vector<8x256xf32> to vector<8x128xf32>
    %13 = vector.extract_strided_slice %11 {offsets = [0, 128], sizes = [8, 128], strides = [1, 1]} : vector<8x256xf32> to vector<8x128xf32>
    %c0_6 = arith.constant 0 : index
    %c0_7 = arith.constant 0 : index
    %14 = vector.load %arg4[%c0_6, %c0_7] : memref<1x128xf32, #tpu.memory_space<vmem>>, vector<1x128xf32>
    %cst_8 = arith.constant 0.000000e+00 : f32
    %15 = vector.broadcast %cst_8 : f32 to vector<8x128xf32>
    %16 = arith.cmpf oeq, %12, %15 : vector<8x128xf32>
    %cst_9 = arith.constant 1.000000e+00 : f32
    %17 = vector.broadcast %cst_9 : f32 to vector<8x128xf32>
    %18 = arith.select %16, %17, %12 : vector<8x128xi1>, vector<8x128xf32>
    %19 = arith.divf %13, %18 : vector<8x128xf32>
    %20 = math.absf %19 : vector<8x128xf32>
    %cst_10 = arith.constant 2.41421366 : f32
    %21 = vector.broadcast %cst_10 : f32 to vector<8x128xf32>
    %22 = arith.cmpf ogt, %20, %21 : vector<8x128xf32>
    %cst_11 = arith.constant 0.414213568 : f32
    %23 = vector.broadcast %cst_11 : f32 to vector<8x128xf32>
    %24 = arith.cmpf ogt, %20, %23 : vector<8x128xf32>
    %cst_12 = arith.constant 1.000000e+00 : f32
    %25 = vector.broadcast %cst_12 : f32 to vector<8x128xf32>
    %26 = arith.select %22, %20, %25 : vector<8x128xi1>, vector<8x128xf32>
    %cst_13 = arith.constant -1.000000e+00 : f32
    %27 = vector.broadcast %cst_13 : f32 to vector<8x128xf32>
    %28 = arith.divf %27, %26 : vector<8x128xf32>
    %cst_14 = arith.constant 1.000000e+00 : f32
    %29 = vector.broadcast %cst_14 : f32 to vector<8x128xf32>
    %30 = arith.subf %20, %29 : vector<8x128xf32>
    %cst_15 = arith.constant 1.000000e+00 : f32
    %31 = vector.broadcast %cst_15 : f32 to vector<8x128xf32>
    %32 = arith.addf %20, %31 : vector<8x128xf32>
    %33 = arith.divf %30, %32 : vector<8x128xf32>
    %34 = arith.select %24, %33, %20 : vector<8x128xi1>, vector<8x128xf32>
    %35 = arith.select %22, %28, %34 : vector<8x128xi1>, vector<8x128xf32>
    %cst_16 = arith.constant 0.785398185 : f32
    %cst_17 = arith.constant 0.000000e+00 : f32
    %36 = vector.broadcast %cst_16 : f32 to vector<8x128xf32>
    %37 = vector.broadcast %cst_17 : f32 to vector<8x128xf32>
    %38 = arith.select %24, %36, %37 : vector<8x128xi1>, vector<8x128xf32>
    %cst_18 = arith.constant 1.57079637 : f32
    %39 = vector.broadcast %cst_18 : f32 to vector<8x128xf32>
    %40 = arith.select %22, %39, %38 : vector<8x128xi1>, vector<8x128xf32>
    %41 = arith.mulf %35, %35 : vector<8x128xf32>
    %cst_19 = arith.constant 0.0805374458 : f32
    %42 = vector.broadcast %cst_19 : f32 to vector<8x128xf32>
    %43 = arith.mulf %42, %41 : vector<8x128xf32>
    %cst_20 = arith.constant 0.138776854 : f32
    %44 = vector.broadcast %cst_20 : f32 to vector<8x128xf32>
    %45 = arith.subf %43, %44 : vector<8x128xf32>
    %46 = arith.mulf %45, %41 : vector<8x128xf32>
    %cst_21 = arith.constant 0.199777111 : f32
    %47 = vector.broadcast %cst_21 : f32 to vector<8x128xf32>
    %48 = arith.addf %46, %47 : vector<8x128xf32>
    %49 = arith.mulf %48, %41 : vector<8x128xf32>
    %cst_22 = arith.constant 0.333329499 : f32
    %50 = vector.broadcast %cst_22 : f32 to vector<8x128xf32>
    %51 = arith.subf %49, %50 : vector<8x128xf32>
    %52 = arith.addf %40, %35 : vector<8x128xf32>
    %53 = arith.mulf %35, %41 : vector<8x128xf32>
    %54 = arith.mulf %53, %51 : vector<8x128xf32>
    %55 = arith.addf %52, %54 : vector<8x128xf32>
    %cst_23 = arith.constant 0.000000e+00 : f32
    %56 = vector.broadcast %cst_23 : f32 to vector<8x128xf32>
    %57 = arith.cmpf olt, %19, %56 : vector<8x128xf32>
    %cst_24 = arith.constant 0.000000e+00 : f32
    %58 = vector.broadcast %cst_24 : f32 to vector<8x128xf32>
    %59 = arith.subf %58, %55 : vector<8x128xf32>
    %60 = arith.select %57, %59, %55 : vector<8x128xi1>, vector<8x128xf32>
    %cst_25 = arith.constant 0.000000e+00 : f32
    %61 = vector.broadcast %cst_25 : f32 to vector<8x128xf32>
    %62 = arith.cmpf oge, %13, %61 : vector<8x128xf32>
    %cst_26 = arith.constant 3.14159274 : f32
    %cst_27 = arith.constant -3.14159274 : f32
    %63 = vector.broadcast %cst_26 : f32 to vector<8x128xf32>
    %64 = vector.broadcast %cst_27 : f32 to vector<8x128xf32>
    %65 = arith.select %62, %63, %64 : vector<8x128xi1>, vector<8x128xf32>
    %cst_28 = arith.constant 0.000000e+00 : f32
    %66 = vector.broadcast %cst_28 : f32 to vector<8x128xf32>
    %67 = arith.cmpf olt, %12, %66 : vector<8x128xf32>
    %68 = arith.addf %60, %65 : vector<8x128xf32>
    %69 = arith.select %67, %68, %60 : vector<8x128xi1>, vector<8x128xf32>
    %cst_29 = arith.constant 0.000000e+00 : f32
    %70 = vector.broadcast %cst_29 : f32 to vector<8x128xf32>
    %71 = arith.cmpf ogt, %13, %70 : vector<8x128xf32>
    %cst_30 = arith.constant 0.000000e+00 : f32
    %72 = vector.broadcast %cst_30 : f32 to vector<8x128xf32>
    %73 = arith.cmpf olt, %13, %72 : vector<8x128xf32>
    %cst_31 = arith.constant -1.57079637 : f32
    %cst_32 = arith.constant 0.000000e+00 : f32
    %74 = vector.broadcast %cst_31 : f32 to vector<8x128xf32>
    %75 = vector.broadcast %cst_32 : f32 to vector<8x128xf32>
    %76 = arith.select %73, %74, %75 : vector<8x128xi1>, vector<8x128xf32>
    %cst_33 = arith.constant 1.57079637 : f32
    %77 = vector.broadcast %cst_33 : f32 to vector<8x128xf32>
    %78 = arith.select %71, %77, %76 : vector<8x128xi1>, vector<8x128xf32>
    %cst_34 = arith.constant 0.000000e+00 : f32
    %79 = vector.broadcast %cst_34 : f32 to vector<8x128xf32>
    %80 = arith.cmpf oeq, %12, %79 : vector<8x128xf32>
    %81 = arith.select %80, %78, %69 : vector<8x128xi1>, vector<8x128xf32>
    %82 = vector.broadcast %14 : vector<1x128xf32> to vector<8x128xf32>
    %83 = arith.subf %82, %81 : vector<8x128xf32>
    %c0_35 = arith.constant 0 : index
    %c0_36 = arith.constant 0 : index
    %84 = vector.load %arg5[%c0_35, %c0_36] : memref<8x128xf32, #tpu.memory_space<vmem>>, vector<8x128xf32>
    tpu.vector_store %arg5[%c0_35, %c0_36], %83 {strides = array<i32>} : memref<8x128xf32, #tpu.memory_space<vmem>>, vector<8x128xf32>,
    return
  }
  func.func @transform_0(%arg0: i32) -> (i32, i32) {
    %c0_i32 = arith.constant 0 : i32
    %c0_i32_0 = arith.constant 0 : i32
    return %arg0, %c0_i32 : i32, i32
  }
  func.func @transform_1(%arg0: i32) -> (i32, i32) {
    %c0_i32 = arith.constant 0 : i32
    %c0_i32_0 = arith.constant 0 : i32
    %c0_i32_1 = arith.constant 0 : i32
    return %c0_i32, %c0_i32_0 : i32, i32
  }
  func.func @transform_2(%arg0: i32) -> (i32, i32) {
    %c0_i32 = arith.constant 0 : i32
    %c0_i32_0 = arith.constant 0 : i32
    %c0_i32_1 = arith.constant 0 : i32
    return %c0_i32, %c0_i32_0 : i32, i32
  }
  func.func @transform_3(%arg0: i32) -> (i32, i32) {
    %c0_i32 = arith.constant 0 : i32
    %c0_i32_0 = arith.constant 0 : i32
    %c0_i32_1 = arith.constant 0 : i32
    return %c0_i32, %c0_i32_0 : i32, i32
  }
  func.func @transform_4(%arg0: i32) -> (i32, i32) {
    %c0_i32 = arith.constant 0 : i32
    %c0_i32_0 = arith.constant 0 : i32
    return %arg0, %c0_i32 : i32, i32
  }
}

</mosaic_0001>

<llo_original>
// kernel: neg.2
$region0: #{neg.2}
  #allocation0 [shape = 's32[1]{0}', space=sflag, size = 0x4, scoped, tag = 'scoped memory for neg.2']
  %s0 = inlined_call_operand.vmem [shape: f32[32,128], index: 0, kind: input, shape index: {}]
  %s1 = inlined_call_operand.vmem [shape: f32[32,128], index: 1, kind: output, shape index: {}]
  %v2 = vld [vmem:[%s0] sm:$0xff]
  %3 = xla_tuple %v2
  %4 = xla_tuple %3
  %v5 = vxor.u32 %v2, 2147483648
  %6 = xla_tuple %v5
  %7 = vst [vmem:[%s1] sm:$0xff] %v5
  %s8 = scalar_lea.vmem %s0, 8
  %v9 = vld [vmem:[%s8] sm:$0xff]
  %10 = xla_tuple %v9
  %11 = xla_tuple %10
  %v12 = vxor.u32 %v9, 2147483648
  %13 = xla_tuple %v12
  %s14 = scalar_lea.vmem %s1, 8
  %15 = vst [vmem:[%s14] sm:$0xff] %v12
  %s16 = scalar_lea.vmem %s0, 16
  %v17 = vld [vmem:[%s16] sm:$0xff]
  %18 = xla_tuple %v17
  %19 = xla_tuple %18
  %v20 = vxor.u32 %v17, 2147483648
  %21 = xla_tuple %v20
  %s22 = scalar_lea.vmem %s1, 16
  %23 = vst [vmem:[%s22] sm:$0xff] %v20
  %s24 = scalar_lea.vmem %s0, 24
  %v25 = vld [vmem:[%s24] sm:$0xff]
  %26 = xla_tuple %v25
  %27 = xla_tuple %26
  %v28 = vxor.u32 %v25, 2147483648
  %29 = xla_tuple %v28
  %s30 = scalar_lea.vmem %s1, 24
  %31 = vst [vmem:[%s30] sm:$0xff] %v28

// kernel: iq_linear.1
$region0: #{iq_linear.1}
  #allocation0 [shape = 'u32[]', space=smem, size = 0x4, offset = 0x4, fixed_abs, tag = 'smem constant byte address 0x4 - core index']
  #allocation1 [shape = 'u32[144,128]{1,0:T(1,128)}', space=vmem, size = 0x12000, scoped, tag = 'internal scratch']
  %s0 = inlined_call_operand.vmem [shape: f32[8,32], index: 0, kind: input, shape index: {}]
  %s1 = inlined_call_operand.vmem [shape: f32[64,256], index: 1, kind: input, shape index: {}]
  %s2 = inlined_call_operand.vmem [shape: f32[1,256], index: 2, kind: input, shape index: {}]
  %s3 = inlined_call_operand.vmem [shape: f32[1,128], index: 3, kind: input, shape index: {}]
  %s4 = inlined_call_operand.hbm [shape: f32[8,128], index: 4, kind: output, shape index: {}]
  %s5 = sld [smem:[#allocation0]]
  $region26: #{iq_linear.1} parent=0
    _
  %s7 = ssub.s32 1, %s5
  %s8 = scalar_select 0, %s7, %s5
  $region1: #{iq_linear.1} parent=0
    #allocation2 [shape = 'u8[4096]{0}', space=vmem, size = 0x1000, scoped, tag = 'output window, operand 0, single buffered']
    #allocation3 [shape = 's32[1]{0}', space=sflag, size = 0x4, scoped, tag = 'scoped memory for iq_linear.1']
    %9 = vsyncpa [#allocation3], 0
    // Predicated region
    $region2: #{iq_linear.1} parent=1 // pred_check
      _
    $region3: #{iq_linear.1} parent=1 // pred_check_branch
      %11 = sbr.rel (0) target = $region5
    $region4: #{iq_linear.1} parent=1 // pred_region
      _
    $region5: #{iq_linear.1} parent=1 // pred_fallthru
      _
    // Predicated region
    $region6: #{iq_linear.1} parent=1 // pred_check
      _
    $region7: #{iq_linear.1} parent=1 // pred_check_branch
      %13 = sbr.rel (0) target = $region9
    $region8: #{iq_linear.1} parent=1 // pred_region
      _
    $region9: #{iq_linear.1} parent=1 // pred_fallthru
      _
    // Predicated region
    $region10: #{iq_linear.1} parent=1 // pred_check
      _
    $region11: #{iq_linear.1} parent=1 // pred_check_branch
      %15 = sbr.rel (0) target = $region13
    $region12: #{iq_linear.1} parent=1 // pred_region
      _
    $region13: #{iq_linear.1} parent=1 // pred_fallthru
      _
    // Predicated region
    $region14: #{iq_linear.1} parent=1 // pred_check
      _
    $region15: #{iq_linear.1} parent=1 // pred_check_branch
      %17 = sbr.rel (0) target = $region17
    $region16: #{iq_linear.1} parent=1 // pred_region
      _
    $region17: #{iq_linear.1} parent=1 // pred_fallthru
      _
    %v18 = vld [vmem:[%s0] sm:$0xff]
    %v19 = vld [vmem:[%s1] sm:$0xff]
    %v20 = vld [vmem:[%s1 + $0x8] sm:$0xff]
    %v21 = vld [vmem:[%s1 + $0x10] sm:$0xff]
    %v22 = vld [vmem:[%s1 + $0x18] sm:$0xff]
    %v23 = vld [vmem:[%s1 + $0x20] sm:$0xff]
    %v24 = vld [vmem:[%s1 + $0x28] sm:$0xff]
    %v25 = vld [vmem:[%s1 + $0x30] sm:$0xff]
    %v26 = vld [vmem:[%s1 + $0x38] sm:$0xff]
    %v27 = vld [vmem:[%s1 + $0x40] sm:$0xff]
    %v28 = vld [vmem:[%s1 + $0x48] sm:$0xff]
    %v29 = vld [vmem:[%s1 + $0x50] sm:$0xff]
    %v30 = vld [vmem:[%s1 + $0x58] sm:$0xff]
    %v31 = vld [vmem:[%s1 + $0x60] sm:$0xff]
    %v32 = vld [vmem:[%s1 + $0x68] sm:$0xff]
    %v33 = vld [vmem:[%s1 + $0x70] sm:$0xff]
    %v34 = vld [vmem:[%s1 + $0x78] sm:$0xff]
    %v35 = vand.u32 2147483647, %v18
    %vm36 = vcmp.le.f32.partialorder %v35, 0.7853982
    %vm37 = vcmp.lt.s32.totalorder %v18, 0
    %v38 = vand.u32 %v18, 2139095040
    %v39 = vshrl.u32 %v38, 23
    %v40 = vsub.s32 %v39, 127
    %v41 = vand.u32 2147483647, %v18
    %v42 = vand.u32 %v41, 8388607
    %v43 = vor.u32 %v42, 8388608
    %v44 = vsub.s32 0, %v43
    %v45 = vadd.s32 %v40, 1
    %vm46 = vcmp.gt.s32.totalorder %v45, 0
    %v47 = vsel %vm46, %v45, 0
    %v48 = vshrl.u32 %v47, 5
    %v49 = vand.u32 %v47, 31
    %v50 = vsub.s32 32, %v49
    %v51 = vshrl.u32 683565275, %v50
    %v52 = vshll.u32 683565275, %v49
    %v53 = vshrl.u32 2475754826, %v50
    %v54 = vor.u32 %v52, %v53
    %v55 = vshll.u32 2475754826, %v49
    %v56 = vshrl.u32 2131351028, %v50
    %v57 = vor.u32 %v55, %v56
    %v58 = vshll.u32 2131351028, %v49
    %v59 = vshrl.u32 2102212464, %v50
    %v60 = vor.u32 %v58, %v59
    %v61 = vshll.u32 2102212464, %v49
    %v62 = vshrl.u32 920167782, %v50
    %v63 = vor.u32 %v61, %v62
    %v64 = vshll.u32 920167782, %v49
    %v65 = vshrl.u32 1326507024, %v50
    %v66 = vor.u32 %v64, %v65
    %vm67 = vcmp.lt.s32.totalorder %v48, 1
    %vm68 = vcmp.lt.s32.totalorder %v48, 2
    %vm69 = vcmp.lt.s32.totalorder %v48, 3
    %vm70 = vcmp.lt.s32.totalorder %v48, 4
    %v71 = vsel %vm67, %v51, %v54
    %v72 = vsel %vm70, %v60, 2102212464
    %v73 = vsel %vm69, %v57, %v72
    %v74 = vsel %vm68, %v71, %v73
    %v75 = vsel %vm67, %v54, %v57
    %v76 = vsel %vm70, %v63, 920167782
    %v77 = vsel %vm69, %v60, %v76
    %v78 = vsel %vm68, %v75, %v77
    %v79 = vsel %vm67, %v57, %v60
    %v80 = vsel %vm70, %v66, 1326507024
    %v81 = vsel %vm69, %v63, %v80
    %v82 = vsel %vm68, %v79, %v81
    %v83 = vshll.u32 %v43, 8
    %v84 = vmul.u32.u64.compose %v83, %v82
    %v85 = vextract.low.u32 %v84
    %v86 = vextract.high.u32 %v84
    %v87 = vmul.u32.u64.compose %v83, %v78
    %v88 = vextract.low.u32 %v87
    %v89 = vextract.high.u32 %v87
    %v90 = vmul.u32 %v83, %v74
    %v91 = vadd.s32 %v86, %v88
    %vm92 = vc.u32 %v86, %v88
    %v93 = vadd.s32 %v89, 1
    %v94 = vsel %vm92, %v93, %v89
    %v95 = vadd.s32 %v90, %v94
    %v96 = vadd.s32 %v95, 536870912
    %v97 = vshrl.u32 %v96, 30
    %v98 = vshll.u32 %v97, 30
    %v99 = vsub.s32 %v95, %v98
    %vm100 = vcmp.lt.s32.totalorder %v99, 0
    %v101 = vsub.s32 0, %v99
    %v102 = vsel %vm100, %v101, %v99
    %v103 = vclz %v102
    %v104 = vsub.s32 %v103, 2
    %vm105 = vcmp.gt.s32.totalorder 0, %v104
    %v106 = vsel %vm105, 0, %v104
    %v107 = vsub.s32 32, %v106
    %v108 = vshll.u32 %v99, %v106
    %v109 = vshrl.u32 %v91, %v107
    %v110 = vor.u32 %v108, %v109
    %v111 = vsub.s32 4294967266, %v106
    %v112 = vadd.s32 %v111, 127
    %v113 = vshll.u32 %v112, 23
    %v114 = vor.u32 4788187, %v113
    %v115 = vand.u32 2147483647, %v114
    %v117 = vcvt.s32.f32 %v110
    %v118 = vmul.f32 %v117, %v115
    %v119 = vxor.u32 %v118, 2147483648
    %v120 = vsel %vm37, %v119, %v118
    %v121 = vsub.s32 4, %v97
    %v122 = vsel %vm37, %v121, %v97
    %v123 = vsel %vm36, %v18, %v120
    %v124 = vsel %vm36, 0, %v122
    %v125 = vcosq.f32.pop %v123
    %v126 = vsinq.f32.pop %v123
    %vm127 = vweird.f32 %v18
    %v128 = vand.u32 %v124, 3
    %vm129 = vcmp.lt.s32.totalorder %v128, 2
    %vm130 = vcmp.eq.s32.totalorder %v128, 0
    %v131 = vxor.u32 %v126, 2147483648
    %v132 = vsel %vm130, %v125, %v131
    %vm133 = vcmp.eq.s32.totalorder %v128, 2
    %v134 = vxor.u32 %v125, 2147483648
    %v135 = vsel %vm133, %v134, %v126
    %v136 = vsel %vm129, %v132, %v135
    %v137 = vsel %vm127, nan, %v136
    %v138 = vand.u32 2147483647, %v18
    %vm139 = vcmp.le.f32.partialorder %v138, 0.7853982
    %vm140 = vcmp.lt.s32.totalorder %v18, 0
    %v141 = vand.u32 %v18, 2139095040
    %v142 = vshrl.u32 %v141, 23
    %v143 = vsub.s32 %v142, 127
    %v144 = vand.u32 2147483647, %v18
    %v145 = vand.u32 %v144, 8388607
    %v146 = vor.u32 %v145, 8388608
    %v147 = vsub.s32 0, %v146
    %v148 = vadd.s32 %v143, 1
    %vm149 = vcmp.gt.s32.totalorder %v148, 0
    %v150 = vsel %vm149, %v148, 0
    %v151 = vshrl.u32 %v150, 5
    %v152 = vand.u32 %v150, 31
    %v153 = vsub.s32 32, %v152
    %v154 = vshrl.u32 683565275, %v153
    %v155 = vshll.u32 683565275, %v152
    %v156 = vshrl.u32 2475754826, %v153
    %v157 = vor.u32 %v155, %v156
    %v158 = vshll.u32 2475754826, %v152
    %v159 = vshrl.u32 2131351028, %v153
    %v160 = vor.u32 %v158, %v159
    %v161 = vshll.u32 2131351028, %v152
    %v162 = vshrl.u32 2102212464, %v153
    %v163 = vor.u32 %v161, %v162
    %v164 = vshll.u32 2102212464, %v152
    %v165 = vshrl.u32 920167782, %v153
    %v166 = vor.u32 %v164, %v165
    %v167 = vshll.u32 920167782, %v152
    %v168 = vshrl.u32 1326507024, %v153
    %v169 = vor.u32 %v167, %v168
    %vm170 = vcmp.lt.s32.totalorder %v151, 1
    %vm171 = vcmp.lt.s32.totalorder %v151, 2
    %vm172 = vcmp.lt.s32.totalorder %v151, 3
    %vm173 = vcmp.lt.s32.totalorder %v151, 4
    %v174 = vsel %vm170, %v154, %v157
    %v175 = vsel %vm173, %v163, 2102212464
    %v176 = vsel %vm172, %v160, %v175
    %v177 = vsel %vm171, %v174, %v176
    %v178 = vsel %vm170, %v157, %v160
    %v179 = vsel %vm173, %v166, 920167782
    %v180 = vsel %vm172, %v163, %v179
    %v181 = vsel %vm171, %v178, %v180
    %v182 = vsel %vm170, %v160, %v163
    %v183 = vsel %vm173, %v169, 1326507024
    %v184 = vsel %vm172, %v166, %v183
    %v185 = vsel %vm171, %v182, %v184
    %v186 = vshll.u32 %v146, 8
    %v187 = vmul.u32.u64.compose %v186, %v185
    %v188 = vextract.low.u32 %v187
    %v189 = vextract.high.u32 %v187
    %v190 = vmul.u32.u64.compose %v186, %v181
    %v191 = vextract.low.u32 %v190
    %v192 = vextract.high.u32 %v190
    %v193 = vmul.u32 %v186, %v177
    %v194 = vadd.s32 %v189, %v191
    %vm195 = vc.u32 %v189, %v191
    %v196 = vadd.s32 %v192, 1
    %v197 = vsel %vm195, %v196, %v192
    %v198 = vadd.s32 %v193, %v197
    %v199 = vadd.s32 %v198, 536870912
    %v200 = vshrl.u32 %v199, 30
    %v201 = vshll.u32 %v200, 30
    %v202 = vsub.s32 %v198, %v201
    %vm203 = vcmp.lt.s32.totalorder %v202, 0
    %v204 = vsub.s32 0, %v202
    %v205 = vsel %vm203, %v204, %v202
    %v206 = vclz %v205
    %v207 = vsub.s32 %v206, 2
    %vm208 = vcmp.gt.s32.totalorder 0, %v207
    %v209 = vsel %vm208, 0, %v207
    %v210 = vsub.s32 32, %v209
    %v211 = vshll.u32 %v202, %v209
    %v212 = vshrl.u32 %v194, %v210
    %v213 = vor.u32 %v211, %v212
    %v214 = vsub.s32 4294967266, %v209
    %v215 = vadd.s32 %v214, 127
    %v216 = vshll.u32 %v215, 23
    %v217 = vor.u32 4788187, %v216
    %v218 = vand.u32 2147483647, %v217
    %v220 = vcvt.s32.f32 %v213
    %v221 = vmul.f32 %v220, %v218
    %v222 = vxor.u32 %v221, 2147483648
    %v223 = vsel %vm140, %v222, %v221
    %v224 = vsub.s32 4, %v200
    %v225 = vsel %vm140, %v224, %v200
    %v226 = vsel %vm139, %v18, %v223
    %v227 = vsel %vm139, 0, %v225
    %v228 = vcosq.f32.pop %v226
    %v229 = vsinq.f32.pop %v226
    %vm230 = vweird.f32 %v18
    %v231 = vadd.s32 %v227, 3
    %v232 = vand.u32 %v231, 3
    %vm233 = vcmp.lt.s32.totalorder %v232, 2
    %vm234 = vcmp.eq.s32.totalorder %v232, 0
    %v235 = vxor.u32 %v229, 2147483648
    %v236 = vsel %vm234, %v228, %v235
    %vm237 = vcmp.eq.s32.totalorder %v232, 2
    %v238 = vxor.u32 %v228, 2147483648
    %v239 = vsel %vm237, %v238, %v229
    %v240 = vsel %vm233, %v236, %v239
    %v241 = vsel %vm230, nan, %v240
    %vm242 = vcmask 261120
    %v244 = vsel %vm242, %v241, 0
    %246 = vmatprep.subr.mxu0 0.0
    %247 = vmatpush1.msra.mxu0 0.0
    %248 = vmatprep.subr.mxu0 0.0
    %249 = vmatpush1.msra.mxu0 0.0
    %250 = vmatprep.subr.mxu0 0.0
    %251 = vmatpush1.msra.mxu0 0.0
    %252 = vmatprep.subr.mxu0 0.0
    %253 = vmatpush1.msra.mxu0 0.0
    %254 = vmatprep.subr.mxu0 0.0
    %255 = vmatpush1.msra.mxu0 0.0
    %256 = vmatprep.subr.mxu0 0.0
    %257 = vmatpush1.msra.mxu0 0.0
    %258 = vmatprep.subr.mxu0 0.0
    %259 = vmatpush1.msra.mxu0 0.0
    %260 = vmatprep.subr.mxu0 0.0
    %261 = vmatpush1.msra.mxu0 0.0
    %262 = vmatprep.subr.mxu0 0.0
    %263 = vmatpush1.msra.mxu0 0.0
    %264 = vmatprep.subr.mxu0 0.0
    %265 = vmatpush1.msra.mxu0 0.0
    %266 = vmatprep.subr.mxu0 0.0
    %267 = vmatpush1.msra.mxu0 0.0
    %268 = vmatprep.subr.mxu0 0.0
    %269 = vmatpush1.msra.mxu0 0.0
    %270 = vmatprep.subr.mxu0 %v34
    %271 = vmatpush1.msra.mxu0 %v33
    %272 = vmatprep.subr.mxu0 %v32
    %273 = vmatpush1.msra.mxu0 %v31
    %274 = vmatprep.subr.mxu0 %v30
    %275 = vmatpush1.msra.mxu0 %v29
    %276 = vmatprep.subr.mxu0 %v28
    %277 = vmatpush1.msra.mxu0 %v27
    %278 = vmatprep.subr.mxu0 0.0
    %279 = vmatpush2.msra.mxu0 0.0
    %280 = vmatprep.subr.mxu0 0.0
    %281 = vmatpush2.msra.mxu0 0.0
    %282 = vmatprep.subr.mxu0 0.0
    %283 = vmatpush2.msra.mxu0 0.0
    %284 = vmatprep.subr.mxu0 0.0
    %285 = vmatpush2.msra.mxu0 0.0
    %286 = vmatprep.subr.mxu0 0.0
    %287 = vmatpush2.msra.mxu0 0.0
    %288 = vmatprep.subr.mxu0 0.0
    %289 = vmatpush2.msra.mxu0 0.0
    %290 = vmatprep.subr.mxu0 0.0
    %291 = vmatpush2.msra.mxu0 0.0
    %292 = vmatprep.subr.mxu0 0.0
    %293 = vmatpush2.msra.mxu0 0.0
    %294 = vmatprep.subr.mxu0 0.0
    %295 = vmatpush2.msra.mxu0 0.0
    %296 = vmatprep.subr.mxu0 0.0
    %297 = vmatpush2.msra.mxu0 0.0
    %298 = vmatprep.subr.mxu0 0.0
    %299 = vmatpush2.msra.mxu0 0.0
    %300 = vmatprep.subr.mxu0 0.0
    %301 = vmatpush2.msra.mxu0 0.0
    %302 = vmatprep.subr.mxu0 0.0
    %303 = vmatpush2.msra.mxu0 0.0
    %304 = vmatprep.subr.mxu0 0.0
    %305 = vmatpush2.msra.mxu0 0.0
    %306 = vmatprep.subr.mxu0 0.0
    %307 = vmatpush2.msra.mxu0 0.0
    %308 = vmatprep.subr.mxu0 0.0
    %309 = vmatpush2.msra.mxu0 0.0
    %310 = vmatprep.mubr.f32.mxu0 0.0
    %311 = vmatmul.mubr.f32.gmra.mxu0 %v244
    %v312 = vpop.f32.mrf.mxu0
    %v313 = vadd.f32 0.0, %v312
    %v314 = vpop.f32.mrf.mxu0
    %v315 = vadd.f32 0.0, %v314
    %316 = vdwg.mxu0
    %v318 = vsel %vm242, %v137, 0
    %320 = vmatprep.subr.mxu0 0.0
    %321 = vmatpush1.msra.mxu0 0.0
    %322 = vmatprep.subr.mxu0 0.0
    %323 = vmatpush1.msra.mxu0 0.0
    %324 = vmatprep.subr.mxu0 0.0
    %325 = vmatpush1.msra.mxu0 0.0
    %326 = vmatprep.subr.mxu0 0.0
    %327 = vmatpush1.msra.mxu0 0.0
    %328 = vmatprep.subr.mxu0 0.0
    %329 = vmatpush1.msra.mxu0 0.0
    %330 = vmatprep.subr.mxu0 0.0
    %331 = vmatpush1.msra.mxu0 0.0
    %332 = vmatprep.subr.mxu0 0.0
    %333 = vmatpush1.msra.mxu0 0.0
    %334 = vmatprep.subr.mxu0 0.0
    %335 = vmatpush1.msra.mxu0 0.0
    %336 = vmatprep.subr.mxu0 0.0
    %337 = vmatpush1.msra.mxu0 0.0
    %338 = vmatprep.subr.mxu0 0.0
    %339 = vmatpush1.msra.mxu0 0.0
    %340 = vmatprep.subr.mxu0 0.0
    %341 = vmatpush1.msra.mxu0 0.0
    %342 = vmatprep.subr.mxu0 0.0
    %343 = vmatpush1.msra.mxu0 0.0
    %344 = vmatprep.subr.mxu0 %v26
    %345 = vmatpush1.msra.mxu0 %v25
    %346 = vmatprep.subr.mxu0 %v24
    %347 = vmatpush1.msra.mxu0 %v23
    %348 = vmatprep.subr.mxu0 %v22
    %349 = vmatpush1.msra.mxu0 %v21
    %350 = vmatprep.subr.mxu0 %v20
    %351 = vmatpush1.msra.mxu0 %v19
    %352 = vmatprep.subr.mxu0 0.0
    %353 = vmatpush2.msra.mxu0 0.0
    %354 = vmatprep.subr.mxu0 0.0
    %355 = vmatpush2.msra.mxu0 0.0
    %356 = vmatprep.subr.mxu0 0.0
    %357 = vmatpush2.msra.mxu0 0.0
    %358 = vmatprep.subr.mxu0 0.0
    %359 = vmatpush2.msra.mxu0 0.0
    %360 = vmatprep.subr.mxu0 0.0
    %361 = vmatpush2.msra.mxu0 0.0
    %362 = vmatprep.subr.mxu0 0.0
    %363 = vmatpush2.msra.mxu0 0.0
    %364 = vmatprep.subr.mxu0 0.0
    %365 = vmatpush2.msra.mxu0 0.0
    %366 = vmatprep.subr.mxu0 0.0
    %367 = vmatpush2.msra.mxu0 0.0
    %368 = vmatprep.subr.mxu0 0.0
    %369 = vmatpush2.msra.mxu0 0.0
    %370 = vmatprep.subr.mxu0 0.0
    %371 = vmatpush2.msra.mxu0 0.0
    %372 = vmatprep.subr.mxu0 0.0
    %373 = vmatpush2.msra.mxu0 0.0
    %374 = vmatprep.subr.mxu0 0.0
    %375 = vmatpush2.msra.mxu0 0.0
    %376 = vmatprep.subr.mxu0 0.0
    %377 = vmatpush2.msra.mxu0 0.0
    %378 = vmatprep.subr.mxu0 0.0
    %379 = vmatpush2.msra.mxu0 0.0
    %380 = vmatprep.subr.mxu0 0.0
    %381 = vmatpush2.msra.mxu0 0.0
    %382 = vmatprep.subr.mxu0 0.0
    %383 = vmatpush2.msra.mxu0 0.0
    %384 = vmatprep.mubr.f32.mxu0 0.0
    %385 = vmatmul.mubr.f32.gmra.mxu0 %v318
    %v386 = vpop.f32.mrf.mxu0
    %v387 = vadd.f32 %v313, %v386
    %v388 = vpop.f32.mrf.mxu0
    %v389 = vadd.f32 %v315, %v388
    %390 = vdwg.mxu0
    %v391 = vld [vmem:[%s2] sm:$0x3]
    %v393 = vlaneseq
    %v394 = vshrl.u32 %v393, 7
    %v395 = vsub.s32 0, %v394
    %v396 = vrot.slane %v391, %v395
    %v397 = vlaneseq
    %v398 = vshrl.u32 %v397, 7
    %v399 = vsub.s32 1, %v398
    %v400 = vrot.slane %v391, %v399
    %v403 = vadd.f32 %v387, %v396
    %v404 = vadd.f32 %v389, %v400
    %v405 = vld [vmem:[%s3] sm:$0x1]
    %vm406 = vcmp.eq.f32.partialorder %v403, 0.0
    %v407 = vsel %vm406, 1.0, %v403
    %v408 = vrcp.pop %v407
    %v409 = vmul.f32 %v404, %v408
    %v410 = vand.u32 2147483647, %v409
    %vm411 = vcmp.gt.f32.partialorder %v410, 2.4142137
    %vm412 = vcmp.gt.f32.partialorder %v410, 0.41421357
    %v413 = vsel %vm411, %v410, 1.0
    %v414 = vrcp.pop %v413
    %v415 = vmul.f32 -1.0, %v414
    %v416 = vsub.f32 %v410, 1.0
    %v417 = vadd.f32 %v410, 1.0
    %v418 = vrcp.pop %v417
    %v419 = vmul.f32 %v416, %v418
    %v420 = vsel %vm412, %v419, %v410
    %v421 = vsel %vm411, %v415, %v420
    %v422 = vsel %vm412, 0.7853982, 0.0
    %v423 = vsel %vm411, 1.5707964, %v422
    %v424 = vmul.f32 %v421, %v421
    %v425 = vmul.f32 %v424, 0.080537446
    %v426 = vsub.f32 %v425, 0.13877685
    %v427 = vmul.f32 %v426, %v424
    %v428 = vadd.f32 %v427, 0.19977711
    %v429 = vmul.f32 %v428, %v424
    %v430 = vsub.f32 %v429, 0.3333295
    %v431 = vadd.f32 %v423, %v421
    %v432 = vmul.f32 %v421, %v424
    %v433 = vmul.f32 %v432, %v430
    %v434 = vadd.f32 %v431, %v433
    %vm435 = vcmp.lt.f32.partialorder %v409, 0.0
    %v436 = vsub.f32 0.0, %v434
    %v437 = vsel %vm435, %v436, %v434
    %vm438 = vcmp.ge.f32.partialorder %v404, 0.0
    %v439 = vsel %vm438, 3.1415927, -3.1415927
    %vm440 = vcmp.lt.f32.partialorder %v403, 0.0
    %v441 = vadd.f32 %v437, %v439
    %v442 = vsel %vm440, %v441, %v437
    %vm443 = vcmp.gt.f32.partialorder %v404, 0.0
    %vm444 = vcmp.lt.f32.partialorder %v404, 0.0
    %v445 = vsel %vm444, -1.5707964, 0.0
    %v446 = vsel %vm443, 1.5707964, %v445
    %v447 = vsel %vm406, %v446, %v442
    %v449 = vlaneseq
    %v450 = vshrl.u32 %v449, 7
    %v451 = vsub.s32 0, %v450
    %v452 = vrot.slane %v405, %v451
    %v454 = vsub.f32 %v452, %v447
    %455 = vst [vmem:[#allocation2] sm:$0xff] %v454
    // Predicated region
    $region18: #{iq_linear.1} parent=1 // pred_check
      _
    $region19: #{iq_linear.1} parent=1 // pred_check_branch
      %457 = sbr.rel (0) target = $region21
    $region20: #{iq_linear.1} parent=1 // pred_region
      %s459 = ssub.s32 128, 128
      %460 = vsyncadd [#allocation3], %s459
      %s462 = sshll.u32 [#allocation2], 4
      %s463 = int_to_ptr.vmem [resolvable:$true] %s462
      %465 = dma.vmem_to_hbm [thread:$0]  %s463, 128, %s4, [#allocation3]
    $region21: #{iq_linear.1} parent=1 // pred_fallthru
      _
    // Predicated region
    $region22: #{iq_linear.1} parent=1 // pred_check
      _
    $region23: #{iq_linear.1} parent=1 // pred_check_branch
      %467 = sbr.rel (0) target = $region25
    $region24: #{iq_linear.1} parent=1 // pred_region
      %468 = dma.done [#allocation3], 128
    $region25: #{iq_linear.1} parent=1 // pred_fallthru
      _
    %469 = vsyncpa [#allocation3], 1

</llo_original>
